<compile_context>
chip_gen: v7x
topology: tpu7x:2x2x1
jax: 0.10.0
libtpu: 0.0.40
codegen_flags: <defaults>
</compile_context>

<pallas_src>
import jax
import jax.numpy as jnp
from jax.experimental import pallas as pl
from jax.experimental.pallas import tpu as pltpu


def prepare_params(params):
    """One-time parameter prep (hoisted out of the per-call hot path).

    torch layout: w_ih (4H, IN), b_ih (4H,), w_hh (4H, H), b_hh (4H,)
      -> single packed operand (IN + H + 1, 4H):
           rows [0, IN)        = Wih^T
           rows [IN, IN + H)   = Whh^T
           row  [IN + H]       = b_ih + b_hh
    One VMEM operand instead of (weight, bias): one fewer DMA descriptor.
    """
    w_ih, b_ih, w_hh, b_hh = params
    w_pack = jnp.concatenate(
        [
            jnp.transpose(w_ih),
            jnp.transpose(w_hh),
            (b_ih + b_hh).reshape(1, -1),
        ],
        axis=0,
    ).astype(jnp.float32)                                   # (IN + H + 1, 4H)
    return w_pack


def lstm_cell_forward(x, h0, c0, w_pack):
    """Mirrors LSTM_cell.forward for seq_sz == 1.

    Returns (hidden_seq, (h, c)) with hidden_seq shaped (4H, B), matching
    torch.cat(list, dim=0).transpose(0, 1) for a single step.
    """
    B, S, IN = x.shape
    assert S == 1, "reference forward is only well-defined for seq_sz == 1"
    H = h0.shape[-1]
    G = 4 * H
    assert c0.shape == (B, G)
    assert w_pack.shape == (IN + H + 1, G)
    # NOTE: keep 4H a multiple of 128 (pad H otherwise) so the h/c stores stay
    # lane-dense / unmasked; IN and H multiples of 8 keep the weight-row slices
    # sublane-aligned.

    def kernel(x_ref, h_ref, c_ref, w_ref, h_out_ref, hseq_out_ref, c_out_ref):
        # (B, 1, IN) -> (B, IN): value-level squeeze of the singleton time dim
        # (done in-kernel so no wrapper-side XLA slice/reshape dispatch).
        x_t = x_ref[...][:, 0, :]                    # (B, IN)
        h = h_ref[...]                               # (B, H)
        c = c_ref[...]                               # (B, 4H)

        w_ih_t = w_ref[0:IN, :]                      # (IN, 4H)
        w_hh_t = w_ref[IN:IN + H, :]                 # (H, 4H)
        b = w_ref[IN + H:IN + H + 1, :]              # (1, 4H) fused bias row

        # z = ih_l0(x) + hh_l0(h) + (b_ih + b_hh); two MXU pushes, f32 acc.
        z = (
            jnp.dot(x_t, w_ih_t, preferred_element_type=jnp.float32)
            + jnp.dot(h, w_hh_t, preferred_element_type=jnp.float32)
            + b
        )

        s = jax.nn.sigmoid(z)                        # ft == it == ot   (EUP)
        t = jnp.tanh(z)                              # gt               (EUP)

        c_new = s * (c + t)                          # cell_state_t(x, h, c_prev)
        ct2 = s * (c_new + t)                        # recomputed in hidden_state_t
        h_new = s * jnp.tanh(ct2)                    # ot * tanh(ct2)

        h_out_ref[...] = h_new                       # lane-dense (B, 4H)
        c_out_ref[...] = c_new                       # lane-dense (B, 4H), aliased c0
        hseq_out_ref[...] = jnp.transpose(h_new)     # (4H, B) via idle XLU slot

    vmem = lambda: pl.BlockSpec(memory_space=pltpu.MemorySpace.VMEM)
    h_new, hidden_seq, c_new = pl.pallas_call(
        kernel,
        out_shape=(
            jax.ShapeDtypeStruct((B, G), jnp.float32),   # h
            jax.ShapeDtypeStruct((G, B), jnp.float32),   # hidden_seq = h^T
            jax.ShapeDtypeStruct((B, G), jnp.float32),   # c
        ),
        in_specs=[vmem(), vmem(), vmem(), vmem()],
        out_specs=(vmem(), vmem(), vmem()),
        input_output_aliases={2: 2},                     # c0 -> c (in-place state)
    )(x, h0, c0, w_pack)

    return hidden_seq, (h_new, c_new)


def _reference_forward(x, h0, c0, params):
    """Pure-JAX reference of the torch module (seq == 1), unfactored math."""
    w_ih, b_ih, w_hh, b_hh = params
    x_t = x[:, 0, :]
    z = x_t @ w_ih.T + b_ih + h0 @ w_hh.T + b_hh
    s = jax.nn.sigmoid(z)
    t = jnp.tanh(z)
    c_new = s * c0 + s * t
    ct2 = s * c_new + s * t
    h_new = s * jnp.tanh(ct2)
    return jnp.transpose(h_new), (h_new, c_new)


def init_params(key, input_length, hidden_length):
    """Deterministic PyTorch-Linear-style init: U(-1/sqrt(fan_in), 1/sqrt(fan_in))."""
    G = 4 * hidden_length
    k1, k2, k3, k4 = jax.random.split(key, 4)
    bnd_ih = 1.0 / jnp.sqrt(input_length)
    bnd_hh = 1.0 / jnp.sqrt(hidden_length)
    w_ih = jax.random.uniform(k1, (G, input_length), jnp.float32, -bnd_ih, bnd_ih)
    b_ih = jax.random.uniform(k2, (G,), jnp.float32, -bnd_ih, bnd_ih)
    w_hh = jax.random.uniform(k3, (G, hidden_length), jnp.float32, -bnd_hh, bnd_hh)
    b_hh = jax.random.uniform(k4, (G,), jnp.float32, -bnd_hh, bnd_hh)
    # reduce_l0 exists in __init__ but is unused in forward; omitted.
    return (w_ih, b_ih, w_hh, b_hh)


if __name__ == "__main__":
    B, SEQ, IN, H = 8, 1, 16, 32      # seq must be 1 (see TODO above); 4H = 128
    key = jax.random.PRNGKey(0)
    kx, kh, kc, kp = jax.random.split(key, 4)

    x = jax.random.normal(kx, (B, SEQ, IN), jnp.float32)
    h0 = jax.random.normal(kh, (B, H), jnp.float32)
    c0 = jax.random.normal(kc, (B, 4 * H), jnp.float32)
    params = init_params(kp, IN, H)

    # One-time parameter prep (outside the per-call hot path).
    w_pack = jax.block_until_ready(prepare_params(params))

    fwd = jax.jit(lstm_cell_forward)
    hidden_seq, (h_out, c_out) = fwd(x, h0, c0, w_pack)
    jax.block_until_ready((hidden_seq, h_out, c_out))

    ref_seq, (ref_h, ref_c) = _reference_forward(x, h0, c0, params)
    assert jnp.allclose(hidden_seq, ref_seq, atol=1e-5, rtol=1e-5)
    assert jnp.allclose(h_out, ref_h, atol=1e-5, rtol=1e-5)
    assert jnp.allclose(c_out, ref_c, atol=1e-5, rtol=1e-5)

    print("KERNEL_OK")
</pallas_src>

<mosaic_0001>
module attributes {stable_mosaic.version = 11 : i64} {
  func.func @kernel(%arg0: memref<8x1x16xf32, #tpu.memory_space<vmem>>, %arg1: memref<8x32xf32, #tpu.memory_space<vmem>>, %arg2: memref<8x128xf32, #tpu.memory_space<vmem>>, %arg3: memref<49x128xf32, #tpu.memory_space<vmem>>, %arg4: memref<8x128xf32, #tpu.memory_space<vmem>>, %arg5: memref<128x8xf32, #tpu.memory_space<vmem>>, %arg6: memref<8x128xf32, #tpu.memory_space<vmem>>) attributes {dimension_semantics = [], scalar_prefetch = 0 : i64, scratch_operands = 0 : i64, tpu.core_type = #tpu.core_type<tc>} {
    %c0 = arith.constant 0 : index
    %c0_0 = arith.constant 0 : index
    %c0_1 = arith.constant 0 : index
    %0 = vector.load %arg0[%c0, %c0_0, %c0_1] : memref<8x1x16xf32, #tpu.memory_space<vmem>>, vector<8x1x16xf32>
    %1 = vector.shape_cast %0 : vector<8x1x16xf32> to vector<8x16xf32>
    %c0_2 = arith.constant 0 : index
    %c0_3 = arith.constant 0 : index
    %2 = vector.load %arg1[%c0_2, %c0_3] : memref<8x32xf32, #tpu.memory_space<vmem>>, vector<8x32xf32>
    %c0_4 = arith.constant 0 : index
    %c0_5 = arith.constant 0 : index
    %3 = vector.load %arg2[%c0_4, %c0_5] : memref<8x128xf32, #tpu.memory_space<vmem>>, vector<8x128xf32>
    %c0_6 = arith.constant 0 : index
    %c0_7 = arith.constant 0 : index
    %4 = vector.load %arg3[%c0_6, %c0_7] : memref<49x128xf32, #tpu.memory_space<vmem>>, vector<16x128xf32>
    %c16 = arith.constant 16 : index
    %c0_8 = arith.constant 0 : index
    %5 = vector.load %arg3[%c16, %c0_8] : memref<49x128xf32, #tpu.memory_space<vmem>>, vector<32x128xf32>
    %c48 = arith.constant 48 : index
    %c0_9 = arith.constant 0 : index
    %6 = vector.load %arg3[%c48, %c0_9] : memref<49x128xf32, #tpu.memory_space<vmem>>, vector<1x128xf32>
    %cst = arith.constant dense<0.000000e+00> : vector<8x128xf32>
    %7 = tpu.matmul %1, %4, %cst {dimension_numbers = #tpu.dot_dimension_numbers<[1], [0], [0], [1], [0, 0, 1, 1], [], []>} : vector<8x16xf32>, vector<16x128xf32>, vector<8x128xf32> -> vector<8x128xf32>
    %cst_10 = arith.constant dense<0.000000e+00> : vector<8x128xf32>
    %8 = tpu.matmul %2, %5, %cst_10 {dimension_numbers = #tpu.dot_dimension_numbers<[1], [0], [0], [1], [0, 0, 1, 1], [], []>} : vector<8x32xf32>, vector<32x128xf32>, vector<8x128xf32> -> vector<8x128xf32>
    %9 = arith.addf %7, %8 : vector<8x128xf32>
    %10 = vector.broadcast %6 : vector<1x128xf32> to vector<8x128xf32>
    %11 = arith.addf %9, %10 : vector<8x128xf32>
    %12 = arith.negf %11 : vector<8x128xf32>
    %13 = math.exp %12 : vector<8x128xf32>
    %cst_11 = arith.constant 1.000000e+00 : f32
    %14 = vector.broadcast %cst_11 : f32 to vector<8x128xf32>
    %15 = arith.addf %14, %13 : vector<8x128xf32>
    %16 = arith.divf %14, %15 : vector<8x128xf32>
    %17 = math.tanh %11 : vector<8x128xf32>
    %18 = arith.addf %3, %17 : vector<8x128xf32>
    %19 = arith.mulf %16, %18 : vector<8x128xf32>
    %20 = arith.addf %19, %17 : vector<8x128xf32>
    %21 = arith.mulf %16, %20 : vector<8x128xf32>
    %22 = math.tanh %21 : vector<8x128xf32>
    %23 = arith.mulf %16, %22 : vector<8x128xf32>
    %c0_12 = arith.constant 0 : index
    %c0_13 = arith.constant 0 : index
    %24 = vector.load %arg4[%c0_12, %c0_13] : memref<8x128xf32, #tpu.memory_space<vmem>>, vector<8x128xf32>
    tpu.vector_store %arg4[%c0_12, %c0_13], %23 {strides = array<i32>} : memref<8x128xf32, #tpu.memory_space<vmem>>, vector<8x128xf32>,
    %c0_14 = arith.constant 0 : index
    %c0_15 = arith.constant 0 : index
    %25 = vector.load %arg6[%c0_14, %c0_15] : memref<8x128xf32, #tpu.memory_space<vmem>>, vector<8x128xf32>
    tpu.vector_store %arg6[%c0_14, %c0_15], %19 {strides = array<i32>} : memref<8x128xf32, #tpu.memory_space<vmem>>, vector<8x128xf32>,
    %26 = tpu.transpose %23, [1, 0] : vector<8x128xf32> -> vector<128x8xf32>
    %c0_16 = arith.constant 0 : index
    %c0_17 = arith.constant 0 : index
    %27 = vector.load %arg5[%c0_16, %c0_17] : memref<128x8xf32, #tpu.memory_space<vmem>>, vector<128x8xf32>
    tpu.vector_store %arg5[%c0_16, %c0_17], %26 {strides = array<i32>} : memref<128x8xf32, #tpu.memory_space<vmem>>, vector<128x8xf32>,
    return
  }
}

</mosaic_0001>

<llo_original>
// kernel: lstm_cell_forward.1
$region0: #{lstm_cell_forward.1}
  #allocation0 [shape = 'u32[]', space=smem, size = 0x4, offset = 0x4, fixed_abs, tag = 'smem constant byte address 0x4 - core index']
  #allocation1 [shape = 'u32[144,128]{1,0:T(1,128)}', space=vmem, size = 0x12000, scoped, tag = 'internal scratch']
  %s0 = inlined_call_operand.vmem [shape: f32[8,1,16], index: 0, kind: input, shape index: {}]
  %s1 = inlined_call_operand.hbm [shape: f32[8,32], index: 1, kind: input, shape index: {}]
  %s2 = inlined_call_operand.vmem [shape: f32[8,128], index: 2, kind: input, shape index: {}, may-alias: {2,6}]
  %s3 = inlined_call_operand.hbm [shape: f32[49,128], index: 3, kind: input, shape index: {}]
  %s4 = inlined_call_operand.hbm [shape: f32[8,128], index: 4, kind: output, shape index: {0}]
  %s5 = inlined_call_operand.vmem [shape: f32[128,8], index: 5, kind: output, shape index: {1}]
  %s6 = inlined_call_operand.vmem [shape: f32[8,128], index: 6, kind: output, shape index: {2}, may-alias: {2,6}]
  %7 = xla_tuple %s4, %s5, %s6
  %s8 = sld [smem:[#allocation0]]
  $region50: #{lstm_cell_forward.1} parent=0
    _
  %s10 = ssub.s32 1, %s8
  %s11 = scalar_select 0, %s10, %s8
  $region1: #{lstm_cell_forward.1} parent=0
    #allocation2 [shape = 'u8[4096]{0}', space=vmem, size = 0x1000, scoped, tag = 'input window, operand 1, single buffered']
    #allocation3 [shape = 's32[1]{0}', space=sflag, size = 0x4, scoped, tag = 'scoped memory for lstm_cell_forward.1']
    #allocation4 [shape = 's32[1]{0}', space=sflag, size = 0x4, scoped, tag = 'scoped memory for lstm_cell_forward.1']
    #allocation5 [shape = 'u8[28672]{0}', space=vmem, size = 0x7000, scoped, tag = 'input window, operand 3, single buffered']
    #allocation6 [shape = 's32[1]{0}', space=sflag, size = 0x4, scoped, tag = 'scoped memory for lstm_cell_forward.1']
    #allocation7 [shape = 'u8[4096]{0}', space=vmem, size = 0x1000, scoped, tag = 'output window, operand 0, single buffered']
    %12 = vsyncpa [#allocation3], 0
    %13 = vsyncpa [#allocation6], 0
    %14 = vsyncpa [#allocation4], 0
    // Predicated region
    $region2: #{lstm_cell_forward.1} parent=1 // pred_check
      _
    $region3: #{lstm_cell_forward.1} parent=1 // pred_check_branch
      %16 = sbr.rel (0) target = $region5
    $region4: #{lstm_cell_forward.1} parent=1 // pred_region
      _
    $region5: #{lstm_cell_forward.1} parent=1 // pred_fallthru
      _
    // Predicated region
    $region6: #{lstm_cell_forward.1} parent=1 // pred_check
      _
    $region7: #{lstm_cell_forward.1} parent=1 // pred_check_branch
      %18 = sbr.rel (0) target = $region9
    $region8: #{lstm_cell_forward.1} parent=1 // pred_region
      %s20 = ssub.s32 128, 128
      %21 = vsyncadd [#allocation3], %s20
      %s23 = sshll.u32 [#allocation2], 4
      %s24 = int_to_ptr.vmem [resolvable:$true] %s23
      %26 = dma.hbm_to_vmem [thread:$0]  %s1, 128, %s24, [#allocation3]
    $region9: #{lstm_cell_forward.1} parent=1 // pred_fallthru
      _
    // Predicated region
    $region10: #{lstm_cell_forward.1} parent=1 // pred_check
      _
    $region11: #{lstm_cell_forward.1} parent=1 // pred_check_branch
      %28 = sbr.rel (0) target = $region13
    $region12: #{lstm_cell_forward.1} parent=1 // pred_region
      _
    $region13: #{lstm_cell_forward.1} parent=1 // pred_fallthru
      _
    // Predicated region
    $region14: #{lstm_cell_forward.1} parent=1 // pred_check
      _
    $region15: #{lstm_cell_forward.1} parent=1 // pred_check_branch
      %30 = sbr.rel (0) target = $region17
    $region16: #{lstm_cell_forward.1} parent=1 // pred_region
      %s32 = ssub.s32 896, 896
      %33 = vsyncadd [#allocation6], %s32
      %s34 = sshll.u32 [#allocation5], 4
      %s35 = int_to_ptr.vmem [resolvable:$true] %s34
      %40 = dma.hbm_to_vmem [thread:$0]  %s3, 896, %s35, [#allocation6], 128, 128, 8
    $region17: #{lstm_cell_forward.1} parent=1 // pred_fallthru
      _
    // Predicated region
    $region18: #{lstm_cell_forward.1} parent=1 // pred_check
      _
    $region19: #{lstm_cell_forward.1} parent=1 // pred_check_branch
      %42 = sbr.rel (0) target = $region21
    $region20: #{lstm_cell_forward.1} parent=1 // pred_region
      %43 = dma.done [#allocation3], 128
    $region21: #{lstm_cell_forward.1} parent=1 // pred_fallthru
      _
    // Predicated region
    $region22: #{lstm_cell_forward.1} parent=1 // pred_check
      _
    $region23: #{lstm_cell_forward.1} parent=1 // pred_check_branch
      %45 = sbr.rel (0) target = $region25
    $region24: #{lstm_cell_forward.1} parent=1 // pred_region
      %46 = dma.done [#allocation6], 896
    $region25: #{lstm_cell_forward.1} parent=1 // pred_fallthru
      _
    %v47 = vld [vmem:[%s0] sm:$0x1]
    %v48 = vld [vmem:[%s0 + $0x1] sm:$0x1]
    %v49 = vld [vmem:[%s0 + $0x2] sm:$0x1]
    %v50 = vld [vmem:[%s0 + $0x3] sm:$0x1]
    %v51 = vld [vmem:[%s0 + $0x4] sm:$0x1]
    %v52 = vld [vmem:[%s0 + $0x5] sm:$0x1]
    %v53 = vld [vmem:[%s0 + $0x6] sm:$0x1]
    %v54 = vld [vmem:[%s0 + $0x7] sm:$0x1]
    %v55 = vld [vmem:[#allocation2] sm:$0xff]
    %v56 = vld [vmem:[%s2] sm:$0xff]
    %v57 = vld [vmem:[#allocation5] sm:$0xff]
    %v58 = vld [vmem:[#allocation5 + $0x8] sm:$0xff]
    %v59 = vld [vmem:[#allocation5 + $0x10] sm:$0xff]
    %v60 = vld [vmem:[#allocation5 + $0x18] sm:$0xff]
    %v61 = vld [vmem:[#allocation5 + $0x20] sm:$0xff]
    %v62 = vld [vmem:[#allocation5 + $0x28] sm:$0xff]
    %v63 = vld [vmem:[#allocation5 + $0x30] sm:$0x1]
    %vm64 = vcmask 261120
    %v66 = vsel %vm64, %v55, 0
    %68 = vmatprep.subr.mxu0 0.0
    %69 = vmatpush1.msra.mxu0 %v59
    %70 = vmatprep.subr.mxu0 0.0
    %71 = vmatpush1.msra.mxu0 %v60
    %72 = vmatprep.subr.mxu0 0.0
    %73 = vmatpush1.msra.mxu0 %v61
    %74 = vmatprep.subr.mxu0 0.0
    %75 = vmatpush1.msra.mxu0 %v62
    %76 = vmatprep.subr.mxu0 0.0
    %77 = vmatpush1.msra.mxu0 0.0
    %78 = vmatprep.subr.mxu0 0.0
    %79 = vmatpush1.msra.mxu0 0.0
    %80 = vmatprep.subr.mxu0 0.0
    %81 = vmatpush1.msra.mxu0 0.0
    %82 = vmatprep.subr.mxu0 0.0
    %83 = vmatpush1.msra.mxu0 0.0
    %84 = vmatprep.subr.mxu0 0.0
    %85 = vmatpush1.msra.mxu0 0.0
    %86 = vmatprep.subr.mxu0 0.0
    %87 = vmatpush1.msra.mxu0 0.0
    %88 = vmatprep.subr.mxu0 0.0
    %89 = vmatpush1.msra.mxu0 0.0
    %90 = vmatprep.subr.mxu0 0.0
    %91 = vmatpush1.msra.mxu0 0.0
    %92 = vmatprep.subr.mxu0 0.0
    %93 = vmatpush1.msra.mxu0 0.0
    %94 = vmatprep.subr.mxu0 0.0
    %95 = vmatpush1.msra.mxu0 0.0
    %96 = vmatprep.subr.mxu0 0.0
    %97 = vmatpush1.msra.mxu0 0.0
    %98 = vmatprep.subr.mxu0 0.0
    %99 = vmatpush1.msra.mxu0 0.0
    %100 = vmatprep.subr.mxu0 0.0
    %101 = vmatpush1.msra.mxu0 0.0
    %102 = vmatprep.subr.mxu0 0.0
    %103 = vmatpush1.msra.mxu0 0.0
    %104 = vmatprep.subr.mxu0 0.0
    %105 = vmatpush1.msra.mxu0 0.0
    %106 = vmatprep.subr.mxu0 0.0
    %107 = vmatpush1.msra.mxu0 0.0
    %108 = vmatprep.subr.mxu0 0.0
    %109 = vmatpush1.msra.mxu0 0.0
    %110 = vmatprep.subr.mxu0 0.0
    %111 = vmatpush1.msra.mxu0 0.0
    %112 = vmatprep.subr.mxu0 0.0
    %113 = vmatpush1.msra.mxu0 0.0
    %114 = vmatprep.subr.mxu0 0.0
    %115 = vmatpush1.msra.mxu0 0.0
    %116 = vmatprep.subr.mxu0 0.0
    %117 = vmatpush1.msra.mxu0 0.0
    %118 = vmatprep.subr.mxu0 0.0
    %119 = vmatpush1.msra.mxu0 0.0
    %120 = vmatprep.subr.mxu0 0.0
    %121 = vmatpush1.msra.mxu0 0.0
    %122 = vmatprep.subr.mxu0 0.0
    %123 = vmatpush1.msra.mxu0 0.0
    %124 = vmatprep.subr.mxu0 0.0
    %125 = vmatpush1.msra.mxu0 0.0
    %126 = vmatprep.subr.mxu0 0.0
    %127 = vmatpush1.msra.mxu0 0.0
    %128 = vmatprep.subr.mxu0 0.0
    %129 = vmatpush1.msra.mxu0 0.0
    %130 = vmatprep.subr.mxu0 0.0
    %131 = vmatpush1.msra.mxu0 0.0
    %132 = vmatprep.mubr.f32.mxu0 0.0
    %133 = vmatmul.mubr.f32.gmra.mrb[0].mxu0 %v66
    %v134 = vpop.f32.mrb[0].mxu0
    %v135 = vadd.f32 0.0, %v134
    %v136 = vpop.f32.mrb[0].mxu0
    %137 = vdwg.mxu0
    %v146 = vcombine.low %v47, %v48
    %v147 = vcombine.low %v49, %v50
    %v148 = vcombine.low %v51, %v52
    %v149 = vcombine.low %v53, %v54
    %v151 = vunpack.c.l.s4 1966171168
    %v152 = vunpack.c.0.s8 %v151
    %v153 = vlaneseq
    %v154 = vshrl.u32 %v153, 7
    %v155 = vsub.s32 %v152, %v154
    %v156 = vrot.slane %v146, %v155
    %v158 = vunpack.c.l.s4 1966171168
    %v159 = vunpack.c.0.s8 %v158
    %v160 = vlaneseq
    %v161 = vshrl.u32 %v160, 7
    %v162 = vsub.s32 %v159, %v161
    %v163 = vrot.slane %v147, %v162
    %v165 = vunpack.c.l.s4 1966171168
    %v166 = vunpack.c.0.s8 %v165
    %v167 = vlaneseq
    %v168 = vshrl.u32 %v167, 7
    %v169 = vsub.s32 %v166, %v168
    %v170 = vrot.slane %v148, %v169
    %v172 = vunpack.c.l.s4 1966171168
    %v173 = vunpack.c.0.s8 %v172
    %v174 = vlaneseq
    %v175 = vshrl.u32 %v174, 7
    %v176 = vsub.s32 %v173, %v175
    %v177 = vrot.slane %v149, %v176
    %v178 = vcombine.low %v156, %v163
    %v179 = vcombine.low %v170, %v177
    %v181 = vunpack.c.l.s4 1966171168
    %v182 = vunpack.c.0.s8 %v181
    %v183 = vlaneseq
    %v184 = vshrl.u32 %v183, 7
    %v185 = vsub.s32 %v182, %v184
    %v186 = vrot.slane %v178, %v185
    %v188 = vunpack.c.l.s4 1966171168
    %v189 = vunpack.c.0.s8 %v188
    %v190 = vlaneseq
    %v191 = vshrl.u32 %v190, 7
    %v192 = vsub.s32 %v189, %v191
    %v193 = vrot.slane %v179, %v192
    %v194 = vcombine.low %v186, %v193
    %vm195 = vcmask 130048
    %v196 = vsel %vm195, %v194, 0
    %198 = vmatprep.subr.mxu0 0.0
    %199 = vmatpush1.msra.mxu0 %v57
    %200 = vmatprep.subr.mxu0 0.0
    %201 = vmatpush1.msra.mxu0 %v58
    %202 = vmatprep.subr.mxu0 0.0
    %203 = vmatpush1.msra.mxu0 0.0
    %204 = vmatprep.subr.mxu0 0.0
    %205 = vmatpush1.msra.mxu0 0.0
    %206 = vmatprep.subr.mxu0 0.0
    %207 = vmatpush1.msra.mxu0 0.0
    %208 = vmatprep.subr.mxu0 0.0
    %209 = vmatpush1.msra.mxu0 0.0
    %210 = vmatprep.subr.mxu0 0.0
    %211 = vmatpush1.msra.mxu0 0.0
    %212 = vmatprep.subr.mxu0 0.0
    %213 = vmatpush1.msra.mxu0 0.0
    %214 = vmatprep.subr.mxu0 0.0
    %215 = vmatpush1.msra.mxu0 0.0
    %216 = vmatprep.subr.mxu0 0.0
    %217 = vmatpush1.msra.mxu0 0.0
    %218 = vmatprep.subr.mxu0 0.0
    %219 = vmatpush1.msra.mxu0 0.0
    %220 = vmatprep.subr.mxu0 0.0
    %221 = vmatpush1.msra.mxu0 0.0
    %222 = vmatprep.subr.mxu0 0.0
    %223 = vmatpush1.msra.mxu0 0.0
    %224 = vmatprep.subr.mxu0 0.0
    %225 = vmatpush1.msra.mxu0 0.0
    %226 = vmatprep.subr.mxu0 0.0
    %227 = vmatpush1.msra.mxu0 0.0
    %228 = vmatprep.subr.mxu0 0.0
    %229 = vmatpush1.msra.mxu0 0.0
    %230 = vmatprep.subr.mxu0 0.0
    %231 = vmatpush1.msra.mxu0 0.0
    %232 = vmatprep.subr.mxu0 0.0
    %233 = vmatpush1.msra.mxu0 0.0
    %234 = vmatprep.subr.mxu0 0.0
    %235 = vmatpush1.msra.mxu0 0.0
    %236 = vmatprep.subr.mxu0 0.0
    %237 = vmatpush1.msra.mxu0 0.0
    %238 = vmatprep.subr.mxu0 0.0
    %239 = vmatpush1.msra.mxu0 0.0
    %240 = vmatprep.subr.mxu0 0.0
    %241 = vmatpush1.msra.mxu0 0.0
    %242 = vmatprep.subr.mxu0 0.0
    %243 = vmatpush1.msra.mxu0 0.0
    %244 = vmatprep.subr.mxu0 0.0
    %245 = vmatpush1.msra.mxu0 0.0
    %246 = vmatprep.subr.mxu0 0.0
    %247 = vmatpush1.msra.mxu0 0.0
    %248 = vmatprep.subr.mxu0 0.0
    %249 = vmatpush1.msra.mxu0 0.0
    %250 = vmatprep.subr.mxu0 0.0
    %251 = vmatpush1.msra.mxu0 0.0
    %252 = vmatprep.subr.mxu0 0.0
    %253 = vmatpush1.msra.mxu0 0.0
    %254 = vmatprep.subr.mxu0 0.0
    %255 = vmatpush1.msra.mxu0 0.0
    %256 = vmatprep.subr.mxu0 0.0
    %257 = vmatpush1.msra.mxu0 0.0
    %258 = vmatprep.subr.mxu0 0.0
    %259 = vmatpush1.msra.mxu0 0.0
    %260 = vmatprep.subr.mxu0 0.0
    %261 = vmatpush1.msra.mxu0 0.0
    %262 = vmatprep.mubr.f32.mxu0 0.0
    %263 = vmatmul.mubr.f32.gmra.mrb[0].mxu0 %v196
    %v264 = vpop.f32.mrb[0].mxu0
    %v265 = vadd.f32 %v135, %v264
    %v266 = vpop.f32.mrb[0].mxu0
    %267 = vdwg.mxu0
    %v268 = vlaneseq
    %v269 = vshrl.u32 %v268, 7
    %v270 = vsub.s32 0, %v269
    %v271 = vrot.slane %v63, %v270
    %v272 = vadd.f32 %v265, %v271
    %v273 = vxor.u32 %v272, 2147483648
    %v274 = vmul.f32 %v273, 1.442695
    %v275 = vpow.pop %v274
    %v276 = vadd.f32 %v275, 1.0
    %v277 = vrcp.pop %v276
    %v278 = vmul.f32 1.0, %v277
    %v279 = vtanh.pop %v272
    %v280 = vadd.f32 %v56, %v279
    %v281 = vmul.f32 %v278, %v280
    %v282 = vadd.f32 %v281, %v279
    %v283 = vmul.f32 %v278, %v282
    %v284 = vtanh.pop %v283
    %v285 = vmul.f32 %v278, %v284
    %286 = vst [vmem:[#allocation7] sm:$0xff] %v285
    %287 = vst [vmem:[%s6] sm:$0xff] %v281
    %288 = vxpose.xlu0.b32.start [1/16] %v285, 128
    %289 = vxpose.xlu0.b32.cont [2/16] 0.0, 128
    %290 = vxpose.xlu0.b32.cont [3/16] 0.0, 128
    %291 = vxpose.xlu0.b32.cont [4/16] 0.0, 128
    %292 = vxpose.xlu0.b32.cont [5/16] 0.0, 128
    %293 = vxpose.xlu0.b32.cont [6/16] 0.0, 128
    %294 = vxpose.xlu0.b32.cont [7/16] 0.0, 128
    %295 = vxpose.xlu0.b32.cont [8/16] 0.0, 128
    %296 = vxpose.xlu0.b32.cont [9/16] 0.0, 128
    %297 = vxpose.xlu0.b32.cont [10/16] 0.0, 128
    %298 = vxpose.xlu0.b32.cont [11/16] 0.0, 128
    %299 = vxpose.xlu0.b32.cont [12/16] 0.0, 128
    %300 = vxpose.xlu0.b32.cont [13/16] 0.0, 128
    %301 = vxpose.xlu0.b32.cont [14/16] 0.0, 128
    %302 = vxpose.xlu0.b32.cont [15/16] 0.0, 128
    %303 = vxpose.xlu0.b32.end [16/16] 0.0, 128
    %v304 = vpop.trf.xlu0
    %v305 = vpop.trf.xlu0
    %v306 = vpop.trf.xlu0
    %v307 = vpop.trf.xlu0
    %v308 = vpop.trf.xlu0
    %v309 = vpop.trf.xlu0
    %v310 = vpop.trf.xlu0
    %v311 = vpop.trf.xlu0
    %v312 = vpop.trf.xlu0
    %v313 = vpop.trf.xlu0
    %v314 = vpop.trf.xlu0
    %v315 = vpop.trf.xlu0
    %v316 = vpop.trf.xlu0
    %v317 = vpop.trf.xlu0
    %v318 = vpop.trf.xlu0
    %v319 = vpop.trf.xlu0
    %vm320 = vcmask 64512
    %321 = vst.msk [vmem:[%s5] sm:$0xff] %vm320, %v304
    %322 = vst.msk [vmem:[%s5 + $0x8] sm:$0xff] %vm320, %v305
    %323 = vst.msk [vmem:[%s5 + $0x10] sm:$0xff] %vm320, %v306
    %324 = vst.msk [vmem:[%s5 + $0x18] sm:$0xff] %vm320, %v307
    %325 = vst.msk [vmem:[%s5 + $0x20] sm:$0xff] %vm320, %v308
    %326 = vst.msk [vmem:[%s5 + $0x28] sm:$0xff] %vm320, %v309
    %327 = vst.msk [vmem:[%s5 + $0x30] sm:$0xff] %vm320, %v310
    %328 = vst.msk [vmem:[%s5 + $0x38] sm:$0xff] %vm320, %v311
    %329 = vst.msk [vmem:[%s5 + $0x40] sm:$0xff] %vm320, %v312
    %330 = vst.msk [vmem:[%s5 + $0x48] sm:$0xff] %vm320, %v313
    %331 = vst.msk [vmem:[%s5 + $0x50] sm:$0xff] %vm320, %v314
    %332 = vst.msk [vmem:[%s5 + $0x58] sm:$0xff] %vm320, %v315
    %333 = vst.msk [vmem:[%s5 + $0x60] sm:$0xff] %vm320, %v316
    %334 = vst.msk [vmem:[%s5 + $0x68] sm:$0xff] %vm320, %v317
    %335 = vst.msk [vmem:[%s5 + $0x70] sm:$0xff] %vm320, %v318
    %336 = vst.msk [vmem:[%s5 + $0x78] sm:$0xff] %vm320, %v319
    // Predicated region
    $region26: #{lstm_cell_forward.1} parent=1 // pred_check
      _
    $region27: #{lstm_cell_forward.1} parent=1 // pred_check_branch
      %338 = sbr.rel (0) target = $region29
    $region28: #{lstm_cell_forward.1} parent=1 // pred_region
      %s340 = ssub.s32 128, 128
      %341 = vsyncadd [#allocation4], %s340
      %s343 = sshll.u32 [#allocation7], 4
      %s344 = int_to_ptr.vmem [resolvable:$true] %s343
      %346 = dma.vmem_to_hbm [thread:$0]  %s344, 128, %s4, [#allocation4]
    $region29: #{lstm_cell_forward.1} parent=1 // pred_fallthru
      _
    // Predicated region
    $region30: #{lstm_cell_forward.1} parent=1 // pred_check
      _
    $region31: #{lstm_cell_forward.1} parent=1 // pred_check_branch
      %348 = sbr.rel (0) target = $region33
    $region32: #{lstm_cell_forward.1} parent=1 // pred_region
      _
    $region33: #{lstm_cell_forward.1} parent=1 // pred_fallthru
      _
    // Predicated region
    $region34: #{lstm_cell_forward.1} parent=1 // pred_check
      _
    $region35: #{lstm_cell_forward.1} parent=1 // pred_check_branch
      %350 = sbr.rel (0) target = $region37
    $region36: #{lstm_cell_forward.1} parent=1 // pred_region
      _
    $region37: #{lstm_cell_forward.1} parent=1 // pred_fallthru
      _
    // Predicated region
    $region38: #{lstm_cell_forward.1} parent=1 // pred_check
      _
    $region39: #{lstm_cell_forward.1} parent=1 // pred_check_branch
      %352 = sbr.rel (0) target = $region41
    $region40: #{lstm_cell_forward.1} parent=1 // pred_region
      %353 = dma.done [#allocation4], 128
    $region41: #{lstm_cell_forward.1} parent=1 // pred_fallthru
      _
    // Predicated region
    $region42: #{lstm_cell_forward.1} parent=1 // pred_check
      _
    $region43: #{lstm_cell_forward.1} parent=1 // pred_check_branch
      %355 = sbr.rel (0) target = $region45
    $region44: #{lstm_cell_forward.1} parent=1 // pred_region
      _
    $region45: #{lstm_cell_forward.1} parent=1 // pred_fallthru
      _
    // Predicated region
    $region46: #{lstm_cell_forward.1} parent=1 // pred_check
      _
    $region47: #{lstm_cell_forward.1} parent=1 // pred_check_branch
      %357 = sbr.rel (0) target = $region49
    $region48: #{lstm_cell_forward.1} parent=1 // pred_region
      _
    $region49: #{lstm_cell_forward.1} parent=1 // pred_fallthru
      _
    %358 = vsyncpa [#allocation3], 1
    %359 = vsyncpa [#allocation6], 1
    %360 = vsyncpa [#allocation4], 1

</llo_original>
